<compile_context>
chip_gen: v5e
topology: v5e:2x2
jax: 0.10.0
libtpu: 0.0.40
codegen_flags: <defaults>
</compile_context>

<pallas_src>
import math

import jax
import jax.numpy as jnp
from jax.experimental import pallas as pl
from jax.experimental.pallas import tpu as pltpu


def _round_up(n: int, m: int) -> int:
    return ((n + m - 1) // m) * m


def _cdiv(a: int, b: int) -> int:
    return -(-a // b)


def _patchify(x, patch_size):
    """Exactly replicates the reference module's
    x.unfold(2,P,P).unfold(3,P,P).reshape(1,-1,P,P).permute(0,2,1,3)
     .reshape(B, num_patches, -1) data movement (row-major, like torch)."""
    B, C, H, W = x.shape
    P = patch_size
    nh, nw = H // P, W // P
    num_patches = nh * nw
    t = x.reshape(B, C, nh, P, nw, P)
    t = jnp.transpose(t, (0, 1, 2, 4, 3, 5))        # == unfold(2).unfold(3)
    t = t.reshape(1, B * C * nh * nw, P, P)         # reshape(1, -1, P, P)
    t = jnp.transpose(t, (0, 2, 1, 3))              # permute(0, 2, 1, 3)
    return t.reshape(B, num_patches, P * P * C)     # reshape(B, num_patches, -1)


def _auto_vmem_limit():
    """Generation-aware VMEM limit: ~3/4 of physical capacity
    (v5e/v6e 128 MiB -> ~96 MiB, v7x 64 MiB -> 48 MiB); conservative fallback
    if the hardware query is unavailable at this point."""
    try:
        cap = getattr(pltpu.get_tpu_info(), "vmem_capacity_bytes", None)
    except Exception:
        cap = None
    if not cap:
        cap = 64 * 1024 * 1024
    return min(int(cap) * 3 // 4, 100 * 1024 * 1024)


def _weight_spec(K, tn):
    """Grid-constant (per column tile) weight block -> single-buffer it so the
    resident weight only costs K*tn*itemsize bytes of VMEM instead of 2x."""
    idx = lambda n, t, b: (0, n)
    try:
        return pl.BlockSpec((K, tn), idx, pipeline_mode=pl.Buffered(1))
    except Exception:
        # Older Pallas without pipeline_mode support: fall back to default.
        return pl.BlockSpec((K, tn), idx)


def _patch_embed_kernel(x_ref, w_ref, add_ref, o_ref):
    # x_ref:   (tp, K)   token rows (row 0 of the full sequence is the zero cls row)
    # w_ref:   (K, tn)   projection weight, (in, out) layout, resident per col-tile
    # add_ref: (tp, tn)  f32 epilogue: pos embed (+ bias on patch rows, + cls on row 0)
    # o_ref:   (tp, tn)
    y = jnp.dot(x_ref[...], w_ref[...], preferred_element_type=jnp.float32)
    o_ref[...] = (y + add_ref[...]).astype(o_ref.dtype)


def patch_embedding_pallas(x, proj_weight_kn, proj_bias, class_embed,
                           position_embed, *, patch_size,
                           tile_rows=512, tile_cols=None,
                           compute_dtype=jnp.bfloat16,
                           vmem_limit_bytes=None):
    """x: (B, C, H, W); proj_weight_kn: (flatten_dim, n_embd) -- i.e. the
    nn.Linear weight PRE-transposed once at init (no per-call transpose).
    Returns (B, 1 + num_patches, n_embd) in x.dtype."""
    B, C, H, W = x.shape
    P = patch_size
    num_patches = (H * W) // (P * P)
    K = P * P * C
    Kw, N = proj_weight_kn.shape
    assert Kw == K, "proj_weight_kn must have shape (patch*patch*C, n_embd)"
    T = 1 + num_patches
    out_dtype = x.dtype

    # ---- tokens: patchify -> (optional) bf16 cast -> one leading zero cls row.
    # All three compose into a single XLA fusion (one HBM write of (B, T, K));
    # no K padding, no separately-materialized concat.
    tokens = _patchify(x, P)
    if compute_dtype is not None:
        tokens = tokens.astype(compute_dtype)
    tokens = jnp.pad(tokens, ((0, 0), (1, 0), (0, 0)))        # (B, T, K)

    w = proj_weight_kn
    if compute_dtype is not None and w.dtype != compute_dtype:
        w = w.astype(compute_dtype)

    # ---- fused additive epilogue term (parameters only -> precompute at init
    # in a real model; cls row gets NO linear bias, matching the reference).
    add = position_embed.reshape(T, N).astype(jnp.float32)
    add = add.at[1:].add(proj_bias.astype(jnp.float32))
    add = add.at[0].add(class_embed.reshape(N).astype(jnp.float32))

    # ---- tile selection (VMEM-budgeted, generation aware) ----
    tok_b = jnp.dtype(tokens.dtype).itemsize
    out_b = jnp.dtype(out_dtype).itemsize
    sub = 16 if min(tok_b, out_b) < 4 else 8        # sublane multiple for row tiles

    vmem_limit = int(vmem_limit_bytes) if vmem_limit_bytes else _auto_vmem_limit()
    budget = int(vmem_limit * 0.7)                  # headroom for internal scratch

    def est(tp_, tn_):
        return (2 * tp_ * K * tok_b                 # tokens, double-buffered
                + K * tn_ * tok_b                   # weight, single-buffered
                + 2 * tp_ * tn_ * 4                 # add (f32), double-buffered
                + 2 * tp_ * tn_ * out_b)            # output, double-buffered

    # row tile (multiple of `sub`, or the full extent which is always legal)
    if T <= tile_rows:
        tp = T
    else:
        tp = min(_round_up(tile_rows, sub), T)

    # column tile: only tiled when the resident weight would blow VMEM (v7x, big N)
    if tile_cols is not None:
        tn = min(int(tile_cols), N)
    else:
        tn = N
        if est(tp, tn) > budget and N > 256:
            c = (N // 256) * 256
            while c > 256 and est(tp, c) > budget:
                c -= 256
            tn = max(256, c)
    # if still over budget, shrink the row tile
    while est(tp, tn) > budget and tp > sub:
        new_tp = max(sub, _round_up(tp // 2, sub))
        if new_tp >= tp:
            break
        tp = new_tp

    # guarantee a handful of grid steps (pipelining + v7x megacore occupancy)
    n_col = _cdiv(N, tn)
    if B * n_col * _cdiv(T, tp) < 4 and tp == T and T > sub:
        want_rows = _cdiv(4, max(1, B * n_col))
        cand = _round_up(_cdiv(T, want_rows), sub)
        if cand < T:
            tp = cand
    n_row = _cdiv(T, tp)

    # grid order (n, t, b): weight index constant across (t, b) -> fetched once
    # per column tile; `add` index constant across the inner batch loop -> not
    # re-DMA'd per batch; ragged row/col tails are handled by masked tail blocks.
    grid = (n_col, n_row, B)

    out = pl.pallas_call(
        _patch_embed_kernel,
        out_shape=jax.ShapeDtypeStruct((B, T, N), out_dtype),
        grid_spec=pltpu.PrefetchScalarGridSpec(
            num_scalar_prefetch=0,
            grid=grid,
            in_specs=[
                pl.BlockSpec((None, tp, K), lambda n, t, b: (b, t, 0)),   # tokens
                _weight_spec(K, tn),                                      # weight
                pl.BlockSpec((tp, tn), lambda n, t, b: (t, n)),           # epilogue
            ],
            out_specs=pl.BlockSpec((None, tp, tn), lambda n, t, b: (b, t, n)),
        ),
        compiler_params=pltpu.CompilerParams(
            dimension_semantics=("parallel", "parallel", "parallel"),
            vmem_limit_bytes=vmem_limit,
        ),
    )(tokens, w, add)
    return out


def patch_embedding_reference(x, proj_weight, proj_bias, class_embed,
                              position_embed, patch_size):
    """Pure-JAX reference (proj_weight in PyTorch (out, in) layout)."""
    B = x.shape[0]
    t = _patchify(x, patch_size)                        # (B, num_patches, K)
    y = t @ jnp.transpose(proj_weight) + proj_bias      # nn.Linear
    cls = jnp.broadcast_to(class_embed, (B, 1, class_embed.shape[-1]))
    y = jnp.concatenate([cls, y], axis=1)
    return y + position_embed


if __name__ == "__main__":
    # config: img 16x16, in_channels=4, patch_size=4, n_embd=128
    B, C, H, W = 2, 4, 16, 16
    patch_size = 4
    n_embd = 128
    num_patches = (H * W) // (patch_size * patch_size)   # 16
    flatten_dim = patch_size * patch_size * C            # 64

    key = jax.random.PRNGKey(0)
    kx, kw, kb, kcls, kpos = jax.random.split(key, 5)

    x = jax.random.normal(kx, (B, C, H, W), dtype=jnp.float32)

    # nn.Linear-style init (weight created in PyTorch (out, in) layout)
    lim = 1.0 / math.sqrt(flatten_dim)
    proj_weight = jax.random.uniform(kw, (n_embd, flatten_dim), jnp.float32, -lim, lim)
    proj_bias = jax.random.uniform(kb, (n_embd,), jnp.float32, -lim, lim)
    # torch.randn-style parameters
    class_embed = jax.random.normal(kcls, (1, 1, n_embd), dtype=jnp.float32)
    position_embed = jax.random.normal(kpos, (1, 1 + num_patches, n_embd),
                                       dtype=jnp.float32)

    # Pre-transpose the projection weight to (K, N) ONCE, outside the hot path
    # (per the perf review: no per-call weight-transpose HBM pass).
    proj_weight_kn = jnp.transpose(proj_weight)

    y_ref = patch_embedding_reference(x, proj_weight, proj_bias, class_embed,
                                      position_embed, patch_size)

    # Default path: bf16 MXU operands, f32 accumulation + f32 epilogue.
    y = patch_embedding_pallas(x, proj_weight_kn, proj_bias, class_embed,
                               position_embed, patch_size=patch_size)
    jax.block_until_ready(y)
    assert y.shape == (B, 1 + num_patches, n_embd)
    # Loosened tolerance: expected bf16 input-rounding error, not a kernel bug.
    assert jnp.allclose(y, y_ref, atol=5e-2, rtol=5e-2), "bf16 path mismatch"

    # Exact-f32 path matches the reference tightly.
    y_f32 = patch_embedding_pallas(x, proj_weight_kn, proj_bias, class_embed,
                                   position_embed, patch_size=patch_size,
                                   compute_dtype=None)
    jax.block_until_ready(y_f32)
    assert jnp.allclose(y_f32, y_ref, atol=1e-4, rtol=1e-4), "f32 path mismatch"

    print("KERNEL_OK")
</pallas_src>

<mosaic_0001>
module attributes {stable_mosaic.version = 11 : i64} {
  func.func @_patch_embed_kernel(%arg0: i32, %arg1: i32, %arg2: i32, %arg3: memref<1x16x64xbf16, #tpu.memory_space<vmem>>, %arg4: memref<64x128xbf16, #tpu.memory_space<vmem>>, %arg5: memref<16x128xf32, #tpu.memory_space<vmem>>, %arg6: memref<1x16x128xf32, #tpu.memory_space<vmem>>) attributes {dimension_semantics = [#tpu.dimension_semantics<parallel>, #tpu.dimension_semantics<parallel>, #tpu.dimension_semantics<parallel>], iteration_bounds = array<i64: 1, 2, 2>, scalar_prefetch = 0 : i64, scratch_operands = 0 : i64, tpu.core_type = #tpu.core_type<tc>, window_params = [{transform_indices = @transform_0, window_bounds = array<i64: 1, 16, 64>}, {pipeline_mode = #tpu.pipeline_mode<synchronous>, transform_indices = @transform_1, window_bounds = array<i64: 64, 128>}, {transform_indices = @transform_2, window_bounds = array<i64: 16, 128>}, {transform_indices = @transform_3, window_bounds = array<i64: 1, 16, 128>}]} {
    %c0 = arith.constant 0 : index
    %c0_0 = arith.constant 0 : index
    %c0_1 = arith.constant 0 : index
    %0 = vector.load %arg3[%c0, %c0_0, %c0_1] : memref<1x16x64xbf16, #tpu.memory_space<vmem>>, vector<1x16x64xbf16>
    %1 = vector.shape_cast %0 : vector<1x16x64xbf16> to vector<16x64xbf16>
    %c0_2 = arith.constant 0 : index
    %c0_3 = arith.constant 0 : index
    %2 = vector.load %arg4[%c0_2, %c0_3] : memref<64x128xbf16, #tpu.memory_space<vmem>>, vector<64x128xbf16>
    %cst = arith.constant dense<0.000000e+00> : vector<16x128xf32>
    %3 = tpu.matmul %1, %2, %cst {dimension_numbers = #tpu.dot_dimension_numbers<[1], [0], [0], [1], [0, 0, 1, 1], [], []>} : vector<16x64xbf16>, vector<64x128xbf16>, vector<16x128xf32> -> vector<16x128xf32>
    %c0_4 = arith.constant 0 : index
    %c0_5 = arith.constant 0 : index
    %4 = vector.load %arg5[%c0_4, %c0_5] : memref<16x128xf32, #tpu.memory_space<vmem>>, vector<16x128xf32>
    %5 = arith.addf %3, %4 : vector<16x128xf32>
    %c0_6 = arith.constant 0 : index
    %c0_7 = arith.constant 0 : index
    %c0_8 = arith.constant 0 : index
    %6 = vector.load %arg6[%c0_6, %c0_7, %c0_8] : memref<1x16x128xf32, #tpu.memory_space<vmem>>, vector<1x16x128xf32>
    %7 = vector.shape_cast %6 : vector<1x16x128xf32> to vector<16x128xf32>
    %8 = vector.shape_cast %5 : vector<16x128xf32> to vector<1x16x128xf32>
    tpu.vector_store %arg6[%c0_6, %c0_7, %c0_8], %8 {strides = array<i32>} : memref<1x16x128xf32, #tpu.memory_space<vmem>>, vector<1x16x128xf32>,
    return
  }
  func.func @transform_0(%arg0: i32, %arg1: i32, %arg2: i32) -> (i32, i32, i32) {
    %c0_i32 = arith.constant 0 : i32
    %c0_i32_0 = arith.constant 0 : i32
    return %arg2, %arg1, %c0_i32 : i32, i32, i32
  }
  func.func @transform_1(%arg0: i32, %arg1: i32, %arg2: i32) -> (i32, i32) {
    %c0_i32 = arith.constant 0 : i32
    %c0_i32_0 = arith.constant 0 : i32
    return %c0_i32, %arg0 : i32, i32
  }
  func.func @transform_2(%arg0: i32, %arg1: i32, %arg2: i32) -> (i32, i32) {
    %c0_i32 = arith.constant 0 : i32
    return %arg1, %arg0 : i32, i32
  }
  func.func @transform_3(%arg0: i32, %arg1: i32, %arg2: i32) -> (i32, i32, i32) {
    %c0_i32 = arith.constant 0 : i32
    return %arg2, %arg1, %arg0 : i32, i32, i32
  }
}

</mosaic_0001>

<llo_original>
// kernel: tpu_custom_call.1
$region0: #{tpu_custom_call.1}
  #allocation0 [shape = 'u32[]', space=smem, size = 0x4, offset = 0x4, fixed_abs, tag = 'smem constant byte address 0x4 - core index']
  #allocation1 [shape = 'u32[72,128]{1,0:T(1,128)}', space=vmem, size = 0x9000, scoped, tag = 'internal scratch']
  %s0 = inlined_call_operand.vmem [shape: bf16[2,17,64], index: 0, kind: input, shape index: {}]
  %s1 = inlined_call_operand.vmem [shape: bf16[64,128], index: 1, kind: input, shape index: {}]
  %s2 = inlined_call_operand.hbm [shape: f32[17,128], index: 2, kind: input, shape index: {}]
  %s3 = inlined_call_operand.vmem [shape: f32[2,17,128], index: 3, kind: output, shape index: {}]
  %s4 = sld [smem:[#allocation0]]
  $region97: #{tpu_custom_call.1} parent=0
    _
  %s6 = ssub.s32 1, %s4
  %s7 = scalar_select 0, %s6, %s4
  $region1: #{tpu_custom_call.1} parent=0
    #allocation2 [shape = 'u8[16384]{0}', space=vmem, size = 0x4000, scoped, tag = 'input window, operand 2']
    #allocation3 [shape = 's32[2]{0}', space=sflag, size = 0x8, scoped, tag = 'scoped memory for tpu_custom_call.1']
    #allocation4 [shape = 'u8[16384]{0}', space=vmem, size = 0x4000, scoped, tag = 'output window, operand 0']
    %8 = vsyncpa [#allocation3], 0
    %s9 = scalar_lea.sflag [#allocation3], 1
    %10 = vsyncpa %s9, 0
    loop: start=0, step=1, limit=6
    $region2: #{tpu_custom_call.1} parent=1 // loop_pre_header
      _
    $region3: #{tpu_custom_call.1} parent=1 // loop_header
      %s12 = sphi 0, %s16
      %p13 = scmp.ge.s32.totalorder %s12, 6
      %s19 = sphi 0, %s38
      %s20 = sphi 0, %s34
      %s21 = sphi 0, %s30
      %s22 = sphi 0, %s19
      %s23 = sphi 0, %s20
      %s24 = sphi 0, %s21
      %s25 = sphi 0, %s22
      %s26 = sphi 0, %s23
      %s27 = sphi 0, %s24
      %s43 = sphi 0, %s45
      %s46 = sphi 0, %s43
      %s47 = sphi 0, %s46
      %s63 = sphi 0, %s47
      %s69 = sphi 0, %s71
      %s72 = sphi 0, %s69
      %s73 = sphi 0, %s72
      %s89 = sphi 0, %s73
      %s97 = sphi 0, %s99
      %s100 = sphi 0, %s97
      %s101 = sphi 0, %s100
      %s117 = sphi 0, %s101
      %s127 = sphi 0, %s129
      %s130 = sphi 0, %s127
      %s131 = sphi 0, %s130
      %s147 = sphi 0, %s131
    $region4: #{tpu_custom_call.1} parent=1 // loop_header_branch
      %15 = sbr.rel (%p13) target = $region8
    $region5: #{tpu_custom_call.1} parent=1 // loop_body
      %s17 = ssub.s32 %s12, 1
      %s18 = ssub.s32 %s12, 2
      %s28 = sadd.s32 1, %s21
      %p29 = scmp.ge.s32.totalorder %s28, 2
      %s30 = scalar_select %p29, 0, %s28
      %s31 = sadd.s32 1, %s20
      %s32 = scalar_select %p29, %s31, %s20
      %p33 = scmp.ge.s32.totalorder %s32, 2
      %s34 = scalar_select %p33, 0, %s32
      %s35 = sadd.s32 1, %s19
      %s36 = scalar_select %p33, %s35, %s19
      %p37 = scmp.ge.s32.totalorder %s36, 1
      %s38 = scalar_select %p37, 0, %s36
      %s39 = ssub.s32 %s21, %s30
      %s40 = ssub.s32 %s20, %s34
      %s41 = sor.u32 %s39, %s40
      %p42 = scmp.eq.s32.totalorder %s41, 0
      %s44 = sadd.s32 %s43, 1
      %s45 = scalar_select %p42, %s43, %s44
      %p48 = pneg %p42
      %p49 = scmp.eq.s32.totalorder %s12, 3
      %p50 = por %p48, %p49
      %p51 = scmp.ne.s32.totalorder %s43, %s46
      %p52 = scmp.eq.s32.totalorder %s12, 0
      %p53 = por %p51, %p52
      %p54 = scmp.ne.s32.totalorder %s43, %s46
      %p55 = scmp.eq.s32.totalorder %s17, 3
      %p56 = por %p54, %p55
      %p57 = scmp.ne.s32.totalorder %s46, %s47
      %p58 = scmp.eq.s32.totalorder %s17, 0
      %p59 = por %p57, %p58
      %p60 = scmp.ne.s32.totalorder %s46, %s47
      %p61 = scmp.eq.s32.totalorder %s18, 3
      %p62 = por %p60, %p61
      %p64 = scmp.ne.s32.totalorder %s47, %s63
      %p65 = scmp.eq.s32.totalorder %s18, 0
      %p66 = por %p64, %p65
      %s67 = ssub.s32 %s19, %s38
      %p68 = scmp.eq.s32.totalorder %s67, 0
      %s70 = sadd.s32 %s69, 1
      %s71 = scalar_select %p68, %s69, %s70
      %p74 = pneg %p68
      %p75 = scmp.eq.s32.totalorder %s12, 3
      %p76 = por %p74, %p75
      %p77 = scmp.ne.s32.totalorder %s69, %s72
      %p78 = scmp.eq.s32.totalorder %s12, 0
      %p79 = por %p77, %p78
      %p80 = scmp.ne.s32.totalorder %s69, %s72
      %p81 = scmp.eq.s32.totalorder %s17, 3
      %p82 = por %p80, %p81
      %p83 = scmp.ne.s32.totalorder %s72, %s73
      %p84 = scmp.eq.s32.totalorder %s17, 0
      %p85 = por %p83, %p84
      %p86 = scmp.ne.s32.totalorder %s72, %s73
      %p87 = scmp.eq.s32.totalorder %s18, 3
      %p88 = por %p86, %p87
      %p90 = scmp.ne.s32.totalorder %s73, %s89
      %p91 = scmp.eq.s32.totalorder %s18, 0
      %p92 = por %p90, %p91
      %s93 = ssub.s32 %s20, %s34
      %s94 = ssub.s32 %s19, %s38
      %s95 = sor.u32 %s93, %s94
      %p96 = scmp.eq.s32.totalorder %s95, 0
      %s98 = sadd.s32 %s97, 1
      %s99 = scalar_select %p96, %s97, %s98
      %p102 = pneg %p96
      %p103 = scmp.eq.s32.totalorder %s12, 3
      %p104 = por %p102, %p103
      %p105 = scmp.ne.s32.totalorder %s97, %s100
      %p106 = scmp.eq.s32.totalorder %s12, 0
      %p107 = por %p105, %p106
      %p108 = scmp.ne.s32.totalorder %s97, %s100
      %p109 = scmp.eq.s32.totalorder %s17, 3
      %p110 = por %p108, %p109
      %p111 = scmp.ne.s32.totalorder %s100, %s101
      %p112 = scmp.eq.s32.totalorder %s17, 0
      %p113 = por %p111, %p112
      %p114 = scmp.ne.s32.totalorder %s100, %s101
      %p115 = scmp.eq.s32.totalorder %s18, 3
      %p116 = por %p114, %p115
      %p118 = scmp.ne.s32.totalorder %s101, %s117
      %p119 = scmp.eq.s32.totalorder %s18, 0
      %p120 = por %p118, %p119
      %s121 = ssub.s32 %s21, %s30
      %s122 = ssub.s32 %s20, %s34
      %s123 = sor.u32 %s121, %s122
      %s124 = ssub.s32 %s19, %s38
      %s125 = sor.u32 %s123, %s124
      %p126 = scmp.eq.s32.totalorder %s125, 0
      %s128 = sadd.s32 %s127, 1
      %s129 = scalar_select %p126, %s127, %s128
      %p132 = pneg %p126
      %p133 = scmp.eq.s32.totalorder %s12, 3
      %p134 = por %p132, %p133
      %p135 = scmp.ne.s32.totalorder %s127, %s130
      %p136 = scmp.eq.s32.totalorder %s12, 0
      %p137 = por %p135, %p136
      %p138 = scmp.ne.s32.totalorder %s127, %s130
      %p139 = scmp.eq.s32.totalorder %s17, 3
      %p140 = por %p138, %p139
      %p141 = scmp.ne.s32.totalorder %s130, %s131
      %p142 = scmp.eq.s32.totalorder %s17, 0
      %p143 = por %p141, %p142
      %p144 = scmp.ne.s32.totalorder %s130, %s131
      %p145 = scmp.eq.s32.totalorder %s18, 3
      %p146 = por %p144, %p145
      %p148 = scmp.ne.s32.totalorder %s131, %s147
      %p149 = scmp.eq.s32.totalorder %s18, 0
      %p150 = por %p148, %p149
      %p151 = scmp.le.s32.totalorder 1, %s12
      %p152 = scmp.lt.s32.totalorder %s12, 5
      %p153 = pnand %p151, %p152
      %p154 = pneg %p153
      // Predicated region
      $region9: #{tpu_custom_call.1} parent=5 // pred_check
        _
      $region10: #{tpu_custom_call.1} parent=5 // pred_check_branch
        %156 = sbr.rel (%p153) target = $region12
      $region11: #{tpu_custom_call.1} parent=5 // pred_region
        %s157 = ssub.s32 %s12, 1
        // Predicated region
        $region13: #{tpu_custom_call.1} parent=11 // pred_check
          %p158 = pneg %p85
        $region14: #{tpu_custom_call.1} parent=11 // pred_check_branch
          %160 = sbr.rel (%p158) target = $region16
        $region15: #{tpu_custom_call.1} parent=11 // pred_region
          %p161 = scmp.lt.s32.totalorder %s22, 0
          %s162 = scalar_select %p161, %s22, 0
          %s163 = smul.addr %s162, 4
          %s164 = scalar_lea.vmem %s1, %s163
        $region16: #{tpu_custom_call.1} parent=11 // pred_fallthru
          _
      $region12: #{tpu_custom_call.1} parent=5 // pred_fallthru
        _
      %p165 = scmp.lt.s32.totalorder %s12, 4
      // Predicated region
      $region17: #{tpu_custom_call.1} parent=5 // pred_check
        %p166 = pneg %p165
      $region18: #{tpu_custom_call.1} parent=5 // pred_check_branch
        %168 = sbr.rel (%p166) target = $region20
      $region19: #{tpu_custom_call.1} parent=5 // pred_region
        // Predicated region
        $region21: #{tpu_custom_call.1} parent=19 // pred_check
          %p169 = pneg %p53
        $region22: #{tpu_custom_call.1} parent=19 // pred_check_branch
          %171 = sbr.rel (%p169) target = $region24
        $region23: #{tpu_custom_call.1} parent=19 // pred_region
          %s172 = smul.u32 2, %s20
          %s173 = ssub.s32 3, %s172
          %p174 = scmp.lt.s32.totalorder %s173, 2
          %s175 = scalar_select %p174, %s173, 2
          %s176 = smul.u32 4, %s175
          %p177 = scmp.lt.s32.totalorder %s21, 1
          %s178 = scalar_select %p177, %s21, 1
          %p179 = scmp.lt.s32.totalorder %s172, 2
          %s180 = scalar_select %p179, %s172, 2
          %s181 = smul.addr %s178, 3
          %s182 = sadd.s32 %s180, %s181
          %s183 = smul.addr %s182, 4
          %s184 = scalar_lea.vmem %s0, %s183
          %s185 = smul.u32 2, %s20
          %s186 = ssub.s32 3, %s185
          %p187 = scmp.lt.s32.totalorder %s186, 2
          %s188 = scalar_select %p187, %s186, 2
          %s189 = smul.u32 4, %s188
        $region24: #{tpu_custom_call.1} parent=19 // pred_fallthru
          _
        // Predicated region
        $region25: #{tpu_custom_call.1} parent=19 // pred_check
          %p190 = pneg %p107
        $region26: #{tpu_custom_call.1} parent=19 // pred_check_branch
          %192 = sbr.rel (%p190) target = $region28
        $region27: #{tpu_custom_call.1} parent=19 // pred_region
          %s193 = sand.u32 %s97, 1
          %s194 = scalar_lea.sflag [#allocation3], %s193
          %s195 = sand.u32 %s97, 1
          %s196 = smul.addr %s195, 16
          %s197 = scalar_lea.vmem [#allocation2], %s196
          %s198 = smul.u32 2, %s20
          %s199 = ssub.s32 3, %s198
          %p200 = scmp.lt.s32.totalorder %s199, 2
          %s201 = scalar_select %p200, %s199, 2
          %s202 = smul.u32 8, %s201
          %s203 = ssub.s32 16, %s202
          %s204 = sshll.u32 %s203, 4
          %205 = vsyncadd %s194, %s204
          %p206 = scmp.ne.s32.totalorder 0, %s202
          %s207 = sadd.s32 %s19, %s198
          %s208 = smul.addr %s207, 8
          %s209 = scalar_lea.hbm %s2, %s208
          %s210 = smul.u32 8, %s201
          %s211 = sshll.u32 %s209, 4
          %s212 = int_to_ptr.hbm [resolvable:$true] %s211
          %s213 = sshll.u32 %s197, 4
          %s214 = int_to_ptr.vmem [resolvable:$true] %s213
          %s215 = sshll.u32 %s210, 4
          %219 = dma.hbm_to_vmem [thread:$0]  (%p206), %s212, %s215, %s214, %s194, 128, 128, 8
        $region28: #{tpu_custom_call.1} parent=19 // pred_fallthru
          _
      $region20: #{tpu_custom_call.1} parent=5 // pred_fallthru
        _
      %p220 = scmp.le.s32.totalorder 1, %s12
      %p221 = scmp.lt.s32.totalorder %s12, 5
      %p222 = pnand %p220, %p221
      %p223 = pneg %p222
      // Predicated region
      $region29: #{tpu_custom_call.1} parent=5 // pred_check
        _
      $region30: #{tpu_custom_call.1} parent=5 // pred_check_branch
        %225 = sbr.rel (%p222) target = $region32
      $region31: #{tpu_custom_call.1} parent=5 // pred_region
        %s226 = ssub.s32 %s12, 1
        %s227 = sand.u32 %s100, 1
        %s228 = scalar_lea.sflag [#allocation3], %s227
        %s229 = sand.u32 %s100, 1
        %s230 = smul.addr %s229, 16
        %s231 = scalar_lea.vmem [#allocation2], %s230
        // Predicated region
        $region33: #{tpu_custom_call.1} parent=31 // pred_check
          %p232 = pneg %p113
        $region34: #{tpu_custom_call.1} parent=31 // pred_check_branch
          %234 = sbr.rel (%p232) target = $region36
        $region35: #{tpu_custom_call.1} parent=31 // pred_region
          %236 = dma.done %s228, 256
        $region36: #{tpu_custom_call.1} parent=31 // pred_fallthru
          _
        %s237 = smul.u32 2, %s23
        %s238 = ssub.s32 3, %s237
        %p239 = scmp.lt.s32.totalorder %s238, 2
        %s240 = scalar_select %p239, %s238, 2
        %s241 = smul.u32 4, %s240
        %p242 = scmp.lt.s32.totalorder %s24, 1
        %s243 = scalar_select %p242, %s24, 1
        %p244 = scmp.lt.s32.totalorder %s237, 2
        %s245 = scalar_select %p244, %s237, 2
        %s246 = smul.addr %s243, 3
        %s247 = sadd.s32 %s245, %s246
        %s248 = smul.addr %s247, 4
        %s249 = scalar_lea.vmem %s0, %s248
        %p250 = pneg %p59
        %p251 = pneg %p56
        %p252 = scmp.lt.s32.totalorder %s22, 0
        %s253 = scalar_select %p252, %s22, 0
        %s254 = smul.addr %s253, 4
        %s255 = scalar_lea.vmem %s1, %s254
        %p256 = pneg %p85
        %p257 = pneg %p82
        %s258 = sand.u32 %s100, 1
        %s259 = scalar_lea.sflag [#allocation3], %s258
        %s260 = sand.u32 %s100, 1
        %s261 = smul.addr %s260, 16
        %s262 = scalar_lea.vmem [#allocation2], %s261
        %p263 = pneg %p113
        %p264 = pneg %p110
        %p265 = pneg %p143
        %p266 = pneg %p140
        %s267 = sand.u32 %s130, 1
        %s268 = sand.u32 %s130, 1
        %s269 = smul.addr %s268, 16
        %s270 = scalar_lea.vmem [#allocation4], %s269
        %s271 = smul.u32 2, %s23
        %s272 = ssub.s32 3, %s271
        %p273 = scmp.lt.s32.totalorder %s272, 2
        %s274 = scalar_select %p273, %s272, 2
        %s275 = smul.u32 4, %s274
        %p276 = scmp.lt.s32.totalorder %s24, 1
        %s277 = scalar_select %p276, %s24, 1
        %p278 = scmp.lt.s32.totalorder %s271, 2
        %s279 = scalar_select %p278, %s271, 2
        %s280 = smul.addr %s277, 3
        %s281 = sadd.s32 %s279, %s280
        %s282 = smul.addr %s281, 4
        %s283 = scalar_lea.vmem %s0, %s282
        %s284 = smul.u32 2, %s23
        %s285 = ssub.s32 3, %s284
        %p286 = scmp.lt.s32.totalorder %s285, 2
        %s287 = scalar_select %p286, %s285, 2
        %s288 = smul.u32 4, %s287
        %p289 = scmp.lt.s32.totalorder %s22, 0
        %s290 = scalar_select %p289, %s22, 0
        %s291 = smul.addr %s290, 4
        %s292 = scalar_lea.vmem %s1, %s291
        %s293 = smul.u32 2, %s23
        %s294 = ssub.s32 3, %s293
        %p295 = scmp.lt.s32.totalorder %s294, 2
        %s296 = scalar_select %p295, %s294, 2
        %s297 = smul.u32 8, %s296
        %s298 = smul.u32 2, %s23
        %s299 = ssub.s32 3, %s298
        %p300 = scmp.lt.s32.totalorder %s299, 2
        %s301 = scalar_select %p300, %s299, 2
        %s302 = smul.u32 8, %s301
        %v304 = vld [vmem:[%s283] sm:$0xf]
        %v305 = vld [vmem:[%s283 + $0x4] sm:$0xf]
        %v306 = vld [vmem:[%s292] sm:$0xf]
        %v307 = vld [vmem:[%s292 + $0x4] sm:$0xf]
        %v308 = vld [vmem:[%s292 + $0x8] sm:$0xf]
        %v309 = vld [vmem:[%s292 + $0xc] sm:$0xf]
        %v310 = vld [vmem:[%s292 + $0x10] sm:$0xf]
        %v311 = vld [vmem:[%s292 + $0x14] sm:$0xf]
        %v312 = vld [vmem:[%s292 + $0x18] sm:$0xf]
        %v313 = vld [vmem:[%s292 + $0x1c] sm:$0xf]
        %v314 = vld [vmem:[%s231] sm:$0xff]
        %v315 = vld [vmem:[%s231 + $0x8] sm:$0xff]
        %v318 = vunpack.c.l.b16 %v304
        %v319 = vunpack.c.l.b16 %v305
        %v320 = vpack.c.b16 %v319, %v318
        %v329 = vunpack.c.l.b16 %v306
        %v330 = vunpack.c.l.b16 %v307
        %v331 = vunpack.c.l.b16 %v308
        %v332 = vunpack.c.l.b16 %v309
        %v333 = vunpack.c.l.b16 %v310
        %v334 = vunpack.c.l.b16 %v311
        %v335 = vunpack.c.l.b16 %v312
        %v336 = vunpack.c.l.b16 %v313
        %v337 = vpack.c.b16 %v330, %v329
        %v338 = vpack.c.b16 %v332, %v331
        %v339 = vpack.c.b16 %v334, %v333
        %v340 = vpack.c.b16 %v336, %v335
        %vm345 = vcmask 523264
        %v347 = vsel %vm345, %v320, 0
        %349 = vmatpush.bf16.msra.mxu0 0
        %350 = vmatpush.bf16.msra.mxu0 0
        %351 = vmatpush.bf16.msra.mxu0 0
        %352 = vmatpush.bf16.msra.mxu0 0
        %353 = vmatpush.bf16.msra.mxu0 %v340
        %354 = vmatpush.bf16.msra.mxu0 %v339
        %355 = vmatpush.bf16.msra.mxu0 %v338
        %356 = vmatpush.bf16.msra.mxu0 %v337
        %357 = vmatmul.bf16.gmra.mxu0 %v347
        %v358 = vpop.f32.mrf.mxu0
        %v359 = vadd.f32 %v314, %v358
        %v360 = vpop.f32.mrf.mxu0
        %v361 = vadd.f32 %v315, %v360
        %362 = vdwg.mxu0
        %363 = vst [vmem:[%s270] sm:$0xff] %v359
        %364 = vst [vmem:[%s270 + $0x8] sm:$0xff] %v361
        %s365 = sand.u32 %s130, 1
        %s366 = sand.u32 %s130, 1
        %s367 = smul.addr %s366, 16
        %s368 = scalar_lea.vmem [#allocation4], %s367
        // Predicated region
        $region37: #{tpu_custom_call.1} parent=31 // pred_check
          %p369 = pneg %p140
        $region38: #{tpu_custom_call.1} parent=31 // pred_check_branch
          %371 = sbr.rel (%p369) target = $region40
        $region39: #{tpu_custom_call.1} parent=31 // pred_region
          %s372 = smul.u32 2, %s23
          %s373 = ssub.s32 3, %s372
          %p374 = scmp.lt.s32.totalorder %s373, 2
          %s375 = scalar_select %p374, %s373, 2
          %s376 = smul.u32 8, %s375
          %p377 = scmp.ne.s32.totalorder 0, %s376
          %s378 = sadd.s32 %s22, %s372
          %s379 = smul.addr %s24, 3
          %s380 = sadd.s32 %s378, %s379
          %s381 = smul.addr %s380, 8
          %s382 = scalar_lea.vmem %s3, %s381
          // Predicated region
          $region41: #{tpu_custom_call.1} parent=39 // pred_check
            %p383 = pneg %p377
          $region42: #{tpu_custom_call.1} parent=39 // pred_check_branch
            %385 = sbr.rel (%p383) target = $region44
          $region43: #{tpu_custom_call.1} parent=39 // pred_region
            // Predicated region
            $region45: #{tpu_custom_call.1} parent=43 // pred_check
              _
            $region46: #{tpu_custom_call.1} parent=43 // pred_check_branch
              %387 = sbr.rel (0) target = $region48
            $region47: #{tpu_custom_call.1} parent=43 // pred_region
              // Predicated region
              $region67: #{tpu_custom_call.1} parent=47 // pred_check
                _
              $region68: #{tpu_custom_call.1} parent=47 // pred_check_branch
                %439 = sbr.rel (0) target = $region70
              $region69: #{tpu_custom_call.1} parent=47 // pred_region
                %s440 = sshrl.u32 %s375, 1
                // While loop
                $region71: #{tpu_custom_call.1} parent=69 // loop_pre_header
                  _
                $region72: #{tpu_custom_call.1} parent=69 // loop_header
                  %s442 = sphi 0, %s444
                  %p443 = scmp.ge.s32.totalorder %s442, %s440
                  %s447 = sphi 0, %s456
                  %s448 = sphi %s368, %s459
                  %s449 = sphi %s382, %s460
                $region73: #{tpu_custom_call.1} parent=69 // loop_header_branch
                  %446 = sbr.rel (%p443) target = $region77
                $region74: #{tpu_custom_call.1} parent=69 // loop_body
                  %v450 = vld [vmem:[%s448] sm:$0xff]
                  %451 = vst [vmem:[%s449] sm:$0xff] %v450
                  %v452 = vld [vmem:[%s448 + $0x8] sm:$0xff]
                  %453 = vst [vmem:[%s449 + $0x8] sm:$0xff] %v452
                  %s454 = sadd.s32 1, %s447
                  %p455 = scmp.ge.s32.totalorder %s454, %s440
                  %s456 = scalar_select %p455, 0, %s454
                  %s457 = smul.u32 %s456, 16
                  %s458 = smul.u32 %s456, 16
                  %s459 = scalar_lea.vmem %s368, %s457 [#allocation4]
                  %s460 = scalar_lea.vmem %s382, %s458
                $region75: #{tpu_custom_call.1} parent=69 // loop_footer
                  %s444 = sadd.s32 %s442, 1
                $region76: #{tpu_custom_call.1} parent=69 // loop_footer_branch
                  %441 = sbr.rel target = $region72
                $region77: #{tpu_custom_call.1} parent=69 // loop_exit
                  _
                %s461 = sshrl.u32 %s375, 1
                %s462 = sand.u32 %s375, 1
                %s463 = smul.u32 %s461, 2
                %s464 = smul.u32 8, %s463
                %s465 = scalar_lea.vmem %s368, %s464 [#allocation4]
                %s466 = smul.u32 8, %s463
                %s467 = scalar_lea.vmem %s382, %s466
                // While loop
                $region78: #{tpu_custom_call.1} parent=69 // loop_pre_header
                  _
                $region79: #{tpu_custom_call.1} parent=69 // loop_header
                  %s469 = sphi 0, %s471
                  %p470 = scmp.ge.s32.totalorder %s469, %s462
                  %s474 = sphi 0, %s481
                  %s475 = sphi %s465, %s484
                  %s476 = sphi %s467, %s485
                $region80: #{tpu_custom_call.1} parent=69 // loop_header_branch
                  %473 = sbr.rel (%p470) target = $region84
                $region81: #{tpu_custom_call.1} parent=69 // loop_body
                  %v477 = vld [vmem:[%s475] sm:$0xff]
                  %478 = vst [vmem:[%s476] sm:$0xff] %v477
                  %s479 = sadd.s32 1, %s474
                  %p480 = scmp.ge.s32.totalorder %s479, %s462
                  %s481 = scalar_select %p480, 0, %s479
                  %s482 = smul.u32 %s481, 8
                  %s483 = smul.u32 %s481, 8
                  %s484 = scalar_lea.vmem %s465, %s482 [#allocation4]
                  %s485 = scalar_lea.vmem %s467, %s483
                $region82: #{tpu_custom_call.1} parent=69 // loop_footer
                  %s471 = sadd.s32 %s469, 1
                $region83: #{tpu_custom_call.1} parent=69 // loop_footer_branch
                  %468 = sbr.rel target = $region79
                $region84: #{tpu_custom_call.1} parent=69 // loop_exit
                  _
              $region70: #{tpu_custom_call.1} parent=47 // pred_fallthru
                _
              // Predicated region
              $region85: #{tpu_custom_call.1} parent=47 // pred_check
                _
              $region86: #{tpu_custom_call.1} parent=47 // pred_check_branch
                %487 = sbr.rel target = $region88
              $region87: #{tpu_custom_call.1} parent=47 // pred_region
                _
              $region88: #{tpu_custom_call.1} parent=47 // pred_fallthru
                _
            $region48: #{tpu_custom_call.1} parent=43 // pred_fallthru
              _
            // Predicated region
            $region49: #{tpu_custom_call.1} parent=43 // pred_check
              _
            $region50: #{tpu_custom_call.1} parent=43 // pred_check_branch
              %389 = sbr.rel target = $region52
            $region51: #{tpu_custom_call.1} parent=43 // pred_region
              %s391 = ssub.s32 256, 1
              %s392 = sshrl.u32 %s375, 1
              // While loop
              $region53: #{tpu_custom_call.1} parent=51 // loop_pre_header
                _
              $region54: #{tpu_custom_call.1} parent=51 // loop_header
                %s394 = sphi 0, %s396
                %p395 = scmp.ge.s32.totalorder %s394, %s392
                %s399 = sphi 0, %s408
                %s400 = sphi %s368, %s411
                %s401 = sphi %s382, %s412
              $region55: #{tpu_custom_call.1} parent=51 // loop_header_branch
                %398 = sbr.rel (%p395) target = $region59
              $region56: #{tpu_custom_call.1} parent=51 // loop_body
                %v402 = vld [vmem:[%s400] sm:%s391]
                %403 = vst [vmem:[%s401] sm:%s391] %v402
                %v404 = vld [vmem:[%s400 + $0x8] sm:%s391]
                %405 = vst [vmem:[%s401 + $0x8] sm:%s391] %v404
                %s406 = sadd.s32 1, %s399
                %p407 = scmp.ge.s32.totalorder %s406, %s392
                %s408 = scalar_select %p407, 0, %s406
                %s409 = smul.u32 %s408, 16
                %s410 = smul.u32 %s408, 16
                %s411 = scalar_lea.vmem %s368, %s409 [#allocation4]
                %s412 = scalar_lea.vmem %s382, %s410
              $region57: #{tpu_custom_call.1} parent=51 // loop_footer
                %s396 = sadd.s32 %s394, 1
              $region58: #{tpu_custom_call.1} parent=51 // loop_footer_branch
                %393 = sbr.rel target = $region54
              $region59: #{tpu_custom_call.1} parent=51 // loop_exit
                _
              %s413 = sshrl.u32 %s375, 1
              %s414 = sand.u32 %s375, 1
              %s415 = smul.u32 %s413, 2
              %s416 = smul.u32 8, %s415
              %s417 = scalar_lea.vmem %s368, %s416 [#allocation4]
              %s418 = smul.u32 8, %s415
              %s419 = scalar_lea.vmem %s382, %s418
              // While loop
              $region60: #{tpu_custom_call.1} parent=51 // loop_pre_header
                _
              $region61: #{tpu_custom_call.1} parent=51 // loop_header
                %s421 = sphi 0, %s423
                %p422 = scmp.ge.s32.totalorder %s421, %s414
                %s426 = sphi 0, %s433
                %s427 = sphi %s417, %s436
                %s428 = sphi %s419, %s437
              $region62: #{tpu_custom_call.1} parent=51 // loop_header_branch
                %425 = sbr.rel (%p422) target = $region66
              $region63: #{tpu_custom_call.1} parent=51 // loop_body
                %v429 = vld [vmem:[%s427] sm:%s391]
                %430 = vst [vmem:[%s428] sm:%s391] %v429
                %s431 = sadd.s32 1, %s426
                %p432 = scmp.ge.s32.totalorder %s431, %s414
                %s433 = scalar_select %p432, 0, %s431
                %s434 = smul.u32 %s433, 8
                %s435 = smul.u32 %s433, 8
                %s436 = scalar_lea.vmem %s417, %s434 [#allocation4]
                %s437 = scalar_lea.vmem %s419, %s435
              $region64: #{tpu_custom_call.1} parent=51 // loop_footer
                %s423 = sadd.s32 %s421, 1
              $region65: #{tpu_custom_call.1} parent=51 // loop_footer_branch
                %420 = sbr.rel target = $region61
              $region66: #{tpu_custom_call.1} parent=51 // loop_exit
                _
            $region52: #{tpu_custom_call.1} parent=43 // pred_fallthru
              _
          $region44: #{tpu_custom_call.1} parent=39 // pred_fallthru
            _
          %488 = vnop
        $region40: #{tpu_custom_call.1} parent=31 // pred_fallthru
          _
      $region32: #{tpu_custom_call.1} parent=5 // pred_fallthru
        _
      %p489 = scmp.le.s32.totalorder 2, %s12
      // Predicated region
      $region89: #{tpu_custom_call.1} parent=5 // pred_check
        %p490 = pneg %p489
      $region90: #{tpu_custom_call.1} parent=5 // pred_check_branch
        %492 = sbr.rel (%p490) target = $region92
      $region91: #{tpu_custom_call.1} parent=5 // pred_region
        %s493 = ssub.s32 %s12, 2
        // Predicated region
        $region93: #{tpu_custom_call.1} parent=91 // pred_check
          %p494 = pneg %p146
        $region94: #{tpu_custom_call.1} parent=91 // pred_check_branch
          %496 = sbr.rel (%p494) target = $region96
        $region95: #{tpu_custom_call.1} parent=91 // pred_region
          %s497 = sand.u32 %s131, 1
          %s498 = sand.u32 %s131, 1
          %s499 = smul.addr %s498, 16
          %s500 = scalar_lea.vmem [#allocation4], %s499
        $region96: #{tpu_custom_call.1} parent=91 // pred_fallthru
          _
      $region92: #{tpu_custom_call.1} parent=5 // pred_fallthru
        _
    $region6: #{tpu_custom_call.1} parent=1 // loop_footer
      %s16 = sadd.s32 1, %s12
    $region7: #{tpu_custom_call.1} parent=1 // loop_footer_branch
      %11 = sbr.rel target = $region3
    $region8: #{tpu_custom_call.1} parent=1 // loop_exit
      _
    %501 = vsyncpa [#allocation3], 1
    %s502 = scalar_lea.sflag [#allocation3], 1
    %503 = vsyncpa %s502, 1

</llo_original>
